<compile_context>
chip_gen: v7x
topology: tpu7x:2x2x1
jax: 0.10.0
libtpu: 0.0.40
codegen_flags: <defaults>
</compile_context>

<pallas_src>
import functools

import jax
import jax.numpy as jnp
from jax.experimental import pallas as pl
from jax.experimental.pallas import tpu as pltpu


def gru_kernel(x_ref, h_ref, wx_ref, whrz_ref, whh_ref, b_ref, out_ref):
    x = x_ref[...]
    h = h_ref[...]
    H = h.shape[-1]

    # Fused input-gate pre-activations [r | z | n] plus the fused bias row.
    xg = jnp.dot(x, wx_ref[...], preferred_element_type=jnp.float32) + b_ref[...]
    # Fused hidden-gate pre-activations [r | z]. (Whh cannot be folded in:
    # rt depends on this product.)
    hg = jnp.dot(h, whrz_ref[...], preferred_element_type=jnp.float32)

    rt = jax.nn.sigmoid(xg[:, 0:H] + hg[:, 0:H])
    zt = jax.nn.sigmoid(xg[:, H:2 * H] + hg[:, H:2 * H])

    h_r = jnp.tanh(
        xg[:, 2 * H:3 * H]
        + jnp.dot(rt * h, whh_ref[...], preferred_element_type=jnp.float32)
    )

    # f32 epilogue blend, cast only at the final store.
    out_ref[...] = ((1.0 - zt) * h + zt * h_r).astype(out_ref.dtype)


@functools.partial(jax.jit, static_argnames=())
def gru_forward(x, h, params):
    """x: (B, D_in), h: (B, H), params: dict of weights/biases. Returns (B, H)."""
    B, H = h.shape

    # Pack once in the wrapper: wide, lane-dense weight slabs for the MXU.
    wx_all = jnp.concatenate(
        [params["Wxr"], params["Wxz"], params["Whx"]], axis=1)          # (D_in, 3H)
    wh_rz = jnp.concatenate([params["Whr"], params["Whz"]], axis=1)      # (H, 2H)
    b_all = jnp.concatenate(
        [params["br"], params["bz"], params["bh"]]).reshape(1, 3 * H)    # (1, 3H)

    vmem = pl.BlockSpec(memory_space=pltpu.MemorySpace.VMEM)
    return pl.pallas_call(
        gru_kernel,
        out_shape=jax.ShapeDtypeStruct((B, H), h.dtype),
        in_specs=[vmem] * 6,
        out_specs=vmem,
        # New hidden state overwrites the old h buffer (arg index 1 -> out 0).
        input_output_aliases={1: 0},
    )(x, h, wx_all, wh_rz, params["Whh"], b_all)


def gru_reference(x, h, params):
    rt = jax.nn.sigmoid(x @ params["Wxr"] + h @ params["Whr"] + params["br"])
    zt = jax.nn.sigmoid(x @ params["Wxz"] + h @ params["Whz"] + params["bz"])
    h_r = jnp.tanh(x @ params["Whx"] + (rt * h) @ params["Whh"] + params["bh"])
    return (1.0 - zt) * h + zt * h_r


if __name__ == "__main__":
    B, D_in, H = 8, 16, 32

    key = jax.random.PRNGKey(0)
    keys = jax.random.split(key, 11)
    scale = 0.1
    params = {
        "Wxr": scale * jax.random.normal(keys[0], (D_in, H), jnp.float32),
        "Wxz": scale * jax.random.normal(keys[1], (D_in, H), jnp.float32),
        "Whr": scale * jax.random.normal(keys[2], (H, H), jnp.float32),
        "Whz": scale * jax.random.normal(keys[3], (H, H), jnp.float32),
        "br":  scale * jax.random.normal(keys[4], (H,), jnp.float32),
        "bz":  scale * jax.random.normal(keys[5], (H,), jnp.float32),
        "Whx": scale * jax.random.normal(keys[6], (D_in, H), jnp.float32),
        "Whh": scale * jax.random.normal(keys[7], (H, H), jnp.float32),
        "bh":  scale * jax.random.normal(keys[8], (H,), jnp.float32),
    }
    x = jax.random.normal(keys[9], (B, D_in), jnp.float32)
    h = jax.random.normal(keys[10], (B, H), jnp.float32)

    # Reference first (h's output buffer is aliased in the kernel call).
    ref = gru_reference(x, h, params)

    out = gru_forward(x, h, params)
    jax.block_until_ready(out)

    assert out.shape == (B, H)
    assert jnp.allclose(out, ref, atol=1e-5, rtol=1e-5), "mismatch vs reference"

    print("KERNEL_OK")
</pallas_src>

<mosaic_0001>
module attributes {stable_mosaic.version = 11 : i64} {
  func.func @gru_kernel(%arg0: memref<8x16xf32, #tpu.memory_space<vmem>>, %arg1: memref<8x32xf32, #tpu.memory_space<vmem>>, %arg2: memref<16x96xf32, #tpu.memory_space<vmem>>, %arg3: memref<32x64xf32, #tpu.memory_space<vmem>>, %arg4: memref<32x32xf32, #tpu.memory_space<vmem>>, %arg5: memref<1x96xf32, #tpu.memory_space<vmem>>, %arg6: memref<8x32xf32, #tpu.memory_space<vmem>>) attributes {dimension_semantics = [], scalar_prefetch = 0 : i64, scratch_operands = 0 : i64, tpu.core_type = #tpu.core_type<tc>} {
    %c0 = arith.constant 0 : index
    %c0_0 = arith.constant 0 : index
    %0 = vector.load %arg0[%c0, %c0_0] : memref<8x16xf32, #tpu.memory_space<vmem>>, vector<8x16xf32>
    %c0_1 = arith.constant 0 : index
    %c0_2 = arith.constant 0 : index
    %1 = vector.load %arg1[%c0_1, %c0_2] : memref<8x32xf32, #tpu.memory_space<vmem>>, vector<8x32xf32>
    %c0_3 = arith.constant 0 : index
    %c0_4 = arith.constant 0 : index
    %2 = vector.load %arg2[%c0_3, %c0_4] : memref<16x96xf32, #tpu.memory_space<vmem>>, vector<16x96xf32>
    %cst = arith.constant dense<0.000000e+00> : vector<8x96xf32>
    %3 = tpu.matmul %0, %2, %cst {dimension_numbers = #tpu.dot_dimension_numbers<[1], [0], [0], [1], [0, 0, 1, 1], [], []>} : vector<8x16xf32>, vector<16x96xf32>, vector<8x96xf32> -> vector<8x96xf32>
    %c0_5 = arith.constant 0 : index
    %c0_6 = arith.constant 0 : index
    %4 = vector.load %arg5[%c0_5, %c0_6] : memref<1x96xf32, #tpu.memory_space<vmem>>, vector<1x96xf32>
    %5 = vector.broadcast %4 : vector<1x96xf32> to vector<8x96xf32>
    %6 = arith.addf %3, %5 : vector<8x96xf32>
    %c0_7 = arith.constant 0 : index
    %c0_8 = arith.constant 0 : index
    %7 = vector.load %arg3[%c0_7, %c0_8] : memref<32x64xf32, #tpu.memory_space<vmem>>, vector<32x64xf32>
    %cst_9 = arith.constant dense<0.000000e+00> : vector<8x64xf32>
    %8 = tpu.matmul %1, %7, %cst_9 {dimension_numbers = #tpu.dot_dimension_numbers<[1], [0], [0], [1], [0, 0, 1, 1], [], []>} : vector<8x32xf32>, vector<32x64xf32>, vector<8x64xf32> -> vector<8x64xf32>
    %9 = vector.extract_strided_slice %6 {offsets = [0, 0], sizes = [8, 32], strides = [1, 1]} : vector<8x96xf32> to vector<8x32xf32>
    %10 = vector.extract_strided_slice %8 {offsets = [0, 0], sizes = [8, 32], strides = [1, 1]} : vector<8x64xf32> to vector<8x32xf32>
    %11 = arith.addf %9, %10 : vector<8x32xf32>
    %12 = arith.negf %11 : vector<8x32xf32>
    %13 = math.exp %12 : vector<8x32xf32>
    %cst_10 = arith.constant 1.000000e+00 : f32
    %14 = vector.broadcast %cst_10 : f32 to vector<8x32xf32>
    %15 = arith.addf %14, %13 : vector<8x32xf32>
    %16 = arith.divf %14, %15 : vector<8x32xf32>
    %17 = vector.extract_strided_slice %6 {offsets = [0, 32], sizes = [8, 32], strides = [1, 1]} : vector<8x96xf32> to vector<8x32xf32>
    %18 = vector.extract_strided_slice %8 {offsets = [0, 32], sizes = [8, 32], strides = [1, 1]} : vector<8x64xf32> to vector<8x32xf32>
    %19 = arith.addf %17, %18 : vector<8x32xf32>
    %20 = arith.negf %19 : vector<8x32xf32>
    %21 = math.exp %20 : vector<8x32xf32>
    %cst_11 = arith.constant 1.000000e+00 : f32
    %22 = vector.broadcast %cst_11 : f32 to vector<8x32xf32>
    %23 = arith.addf %22, %21 : vector<8x32xf32>
    %24 = arith.divf %22, %23 : vector<8x32xf32>
    %25 = vector.extract_strided_slice %6 {offsets = [0, 64], sizes = [8, 32], strides = [1, 1]} : vector<8x96xf32> to vector<8x32xf32>
    %26 = arith.mulf %16, %1 : vector<8x32xf32>
    %c0_12 = arith.constant 0 : index
    %c0_13 = arith.constant 0 : index
    %27 = vector.load %arg4[%c0_12, %c0_13] : memref<32x32xf32, #tpu.memory_space<vmem>>, vector<32x32xf32>
    %cst_14 = arith.constant dense<0.000000e+00> : vector<8x32xf32>
    %28 = tpu.matmul %26, %27, %cst_14 {dimension_numbers = #tpu.dot_dimension_numbers<[1], [0], [0], [1], [0, 0, 1, 1], [], []>} : vector<8x32xf32>, vector<32x32xf32>, vector<8x32xf32> -> vector<8x32xf32>
    %29 = arith.addf %25, %28 : vector<8x32xf32>
    %30 = math.tanh %29 : vector<8x32xf32>
    %cst_15 = arith.constant 1.000000e+00 : f32
    %31 = vector.broadcast %cst_15 : f32 to vector<8x32xf32>
    %32 = arith.subf %31, %24 : vector<8x32xf32>
    %33 = arith.mulf %32, %1 : vector<8x32xf32>
    %34 = arith.mulf %24, %30 : vector<8x32xf32>
    %35 = arith.addf %33, %34 : vector<8x32xf32>
    %c0_16 = arith.constant 0 : index
    %c0_17 = arith.constant 0 : index
    %36 = vector.load %arg6[%c0_16, %c0_17] : memref<8x32xf32, #tpu.memory_space<vmem>>, vector<8x32xf32>
    tpu.vector_store %arg6[%c0_16, %c0_17], %35 {strides = array<i32>} : memref<8x32xf32, #tpu.memory_space<vmem>>, vector<8x32xf32>,
    return
  }
}

</mosaic_0001>

<llo_original>
// kernel: gru_forward.1
$region0: #{gru_forward.1}
  #allocation0 [shape = 'u32[]', space=smem, size = 0x4, offset = 0x4, fixed_abs, tag = 'smem constant byte address 0x4 - core index']
  #allocation1 [shape = 'u32[144,128]{1,0:T(1,128)}', space=vmem, size = 0x12000, scoped, tag = 'internal scratch']
  %s0 = inlined_call_operand.vmem [shape: f32[8,16], index: 0, kind: input, shape index: {}]
  %s1 = inlined_call_operand.hbm [shape: f32[8,32], index: 1, kind: input, shape index: {}, may-alias: {1,6}]
  %s2 = inlined_call_operand.vmem [shape: f32[16,96], index: 2, kind: input, shape index: {}]
  %s3 = inlined_call_operand.vmem [shape: f32[32,64], index: 3, kind: input, shape index: {}]
  %s4 = inlined_call_operand.vmem [shape: f32[32,32], index: 4, kind: input, shape index: {}]
  %s5 = inlined_call_operand.vmem [shape: f32[1,96], index: 5, kind: input, shape index: {}]
  %s6 = inlined_call_operand.hbm [shape: f32[8,32], index: 6, kind: output, shape index: {}, may-alias: {1,6}]
  %s7 = sld [smem:[#allocation0]]
  $region38: #{gru_forward.1} parent=0
    _
  %s9 = ssub.s32 1, %s7
  %s10 = scalar_select 0, %s9, %s7
  $region1: #{gru_forward.1} parent=0
    #allocation2 [shape = 'u8[4096]{0}', space=vmem, size = 0x1000, scoped, tag = 'input window, operand 1, single buffered']
    #allocation3 [shape = 's32[1]{0}', space=sflag, size = 0x4, scoped, tag = 'scoped memory for gru_forward.1']
    #allocation4 [shape = 's32[1]{0}', space=sflag, size = 0x4, scoped, tag = 'scoped memory for gru_forward.1']
    #allocation5 [shape = 'u8[4096]{0}', space=vmem, size = 0x1000, scoped, tag = 'output window, operand 0, single buffered']
    %11 = vsyncpa [#allocation3], 0
    %12 = vsyncpa [#allocation4], 0
    // Predicated region
    $region2: #{gru_forward.1} parent=1 // pred_check
      _
    $region3: #{gru_forward.1} parent=1 // pred_check_branch
      %14 = sbr.rel (0) target = $region5
    $region4: #{gru_forward.1} parent=1 // pred_region
      _
    $region5: #{gru_forward.1} parent=1 // pred_fallthru
      _
    // Predicated region
    $region6: #{gru_forward.1} parent=1 // pred_check
      _
    $region7: #{gru_forward.1} parent=1 // pred_check_branch
      %16 = sbr.rel (0) target = $region9
    $region8: #{gru_forward.1} parent=1 // pred_region
      %s18 = ssub.s32 128, 128
      %19 = vsyncadd [#allocation3], %s18
      %s21 = sshll.u32 [#allocation2], 4
      %s22 = int_to_ptr.vmem [resolvable:$true] %s21
      %24 = dma.hbm_to_vmem [thread:$0]  %s1, 128, %s22, [#allocation3]
    $region9: #{gru_forward.1} parent=1 // pred_fallthru
      _
    // Predicated region
    $region10: #{gru_forward.1} parent=1 // pred_check
      _
    $region11: #{gru_forward.1} parent=1 // pred_check_branch
      %26 = sbr.rel (0) target = $region13
    $region12: #{gru_forward.1} parent=1 // pred_region
      _
    $region13: #{gru_forward.1} parent=1 // pred_fallthru
      _
    // Predicated region
    $region14: #{gru_forward.1} parent=1 // pred_check
      _
    $region15: #{gru_forward.1} parent=1 // pred_check_branch
      %28 = sbr.rel (0) target = $region17
    $region16: #{gru_forward.1} parent=1 // pred_region
      _
    $region17: #{gru_forward.1} parent=1 // pred_fallthru
      _
    // Predicated region
    $region18: #{gru_forward.1} parent=1 // pred_check
      _
    $region19: #{gru_forward.1} parent=1 // pred_check_branch
      %30 = sbr.rel (0) target = $region21
    $region20: #{gru_forward.1} parent=1 // pred_region
      _
    $region21: #{gru_forward.1} parent=1 // pred_fallthru
      _
    // Predicated region
    $region22: #{gru_forward.1} parent=1 // pred_check
      _
    $region23: #{gru_forward.1} parent=1 // pred_check_branch
      %32 = sbr.rel (0) target = $region25
    $region24: #{gru_forward.1} parent=1 // pred_region
      _
    $region25: #{gru_forward.1} parent=1 // pred_fallthru
      _
    // Predicated region
    $region26: #{gru_forward.1} parent=1 // pred_check
      _
    $region27: #{gru_forward.1} parent=1 // pred_check_branch
      %34 = sbr.rel (0) target = $region29
    $region28: #{gru_forward.1} parent=1 // pred_region
      %35 = dma.done [#allocation3], 128
    $region29: #{gru_forward.1} parent=1 // pred_fallthru
      _
    %v36 = vld [vmem:[%s0] sm:$0xff]
    %v37 = vld [vmem:[#allocation2] sm:$0xff]
    %v38 = vld [vmem:[%s2] sm:$0xff]
    %v39 = vld [vmem:[%s2 + $0x8] sm:$0xff]
    %v40 = vld [vmem:[%s5] sm:$0x1]
    %v42 = vlaneseq
    %v43 = vshrl.u32 %v42, 7
    %v44 = vsub.s32 0, %v43
    %v45 = vrot.slane %v40, %v44
    %vm47 = vcmask 130048
    %v49 = vsel %vm47, %v36, 0
    %51 = vmatprep.subr.mxu0 0.0
    %52 = vmatpush1.msra.mxu0 %v38
    %53 = vmatprep.subr.mxu0 0.0
    %54 = vmatpush1.msra.mxu0 %v39
    %55 = vmatprep.subr.mxu0 0.0
    %56 = vmatpush1.msra.mxu0 0.0
    %57 = vmatprep.subr.mxu0 0.0
    %58 = vmatpush1.msra.mxu0 0.0
    %59 = vmatprep.subr.mxu0 0.0
    %60 = vmatpush1.msra.mxu0 0.0
    %61 = vmatprep.subr.mxu0 0.0
    %62 = vmatpush1.msra.mxu0 0.0
    %63 = vmatprep.subr.mxu0 0.0
    %64 = vmatpush1.msra.mxu0 0.0
    %65 = vmatprep.subr.mxu0 0.0
    %66 = vmatpush1.msra.mxu0 0.0
    %67 = vmatprep.subr.mxu0 0.0
    %68 = vmatpush1.msra.mxu0 0.0
    %69 = vmatprep.subr.mxu0 0.0
    %70 = vmatpush1.msra.mxu0 0.0
    %71 = vmatprep.subr.mxu0 0.0
    %72 = vmatpush1.msra.mxu0 0.0
    %73 = vmatprep.subr.mxu0 0.0
    %74 = vmatpush1.msra.mxu0 0.0
    %75 = vmatprep.subr.mxu0 0.0
    %76 = vmatpush1.msra.mxu0 0.0
    %77 = vmatprep.subr.mxu0 0.0
    %78 = vmatpush1.msra.mxu0 0.0
    %79 = vmatprep.subr.mxu0 0.0
    %80 = vmatpush1.msra.mxu0 0.0
    %81 = vmatprep.subr.mxu0 0.0
    %82 = vmatpush1.msra.mxu0 0.0
    %83 = vmatprep.subr.mxu0 0.0
    %84 = vmatpush1.msra.mxu0 0.0
    %85 = vmatprep.subr.mxu0 0.0
    %86 = vmatpush1.msra.mxu0 0.0
    %87 = vmatprep.subr.mxu0 0.0
    %88 = vmatpush1.msra.mxu0 0.0
    %89 = vmatprep.subr.mxu0 0.0
    %90 = vmatpush1.msra.mxu0 0.0
    %91 = vmatprep.subr.mxu0 0.0
    %92 = vmatpush1.msra.mxu0 0.0
    %93 = vmatprep.subr.mxu0 0.0
    %94 = vmatpush1.msra.mxu0 0.0
    %95 = vmatprep.subr.mxu0 0.0
    %96 = vmatpush1.msra.mxu0 0.0
    %97 = vmatprep.subr.mxu0 0.0
    %98 = vmatpush1.msra.mxu0 0.0
    %99 = vmatprep.subr.mxu0 0.0
    %100 = vmatpush1.msra.mxu0 0.0
    %101 = vmatprep.subr.mxu0 0.0
    %102 = vmatpush1.msra.mxu0 0.0
    %103 = vmatprep.subr.mxu0 0.0
    %104 = vmatpush1.msra.mxu0 0.0
    %105 = vmatprep.subr.mxu0 0.0
    %106 = vmatpush1.msra.mxu0 0.0
    %107 = vmatprep.subr.mxu0 0.0
    %108 = vmatpush1.msra.mxu0 0.0
    %109 = vmatprep.subr.mxu0 0.0
    %110 = vmatpush1.msra.mxu0 0.0
    %111 = vmatprep.subr.mxu0 0.0
    %112 = vmatpush1.msra.mxu0 0.0
    %113 = vmatprep.subr.mxu0 0.0
    %114 = vmatpush1.msra.mxu0 0.0
    %115 = vmatprep.mubr.f32.mxu0 0.0
    %116 = vmatmul.mubr.f32.gmra.mrb[0].mxu0 %v49
    %v117 = vpop.f32.mrb[0].mxu0
    %v118 = vadd.f32 %v45, %v117
    %v119 = vpop.f32.mrb[0].mxu0
    %120 = vdwg.mxu0
    %v121 = vld [vmem:[%s3] sm:$0xff]
    %v122 = vld [vmem:[%s3 + $0x8] sm:$0xff]
    %v123 = vld [vmem:[%s3 + $0x10] sm:$0xff]
    %v124 = vld [vmem:[%s3 + $0x18] sm:$0xff]
    %vm125 = vcmask 261120
    %v127 = vsel %vm125, %v37, 0
    %129 = vmatprep.subr.mxu0 0.0
    %130 = vmatpush1.msra.mxu0 %v121
    %131 = vmatprep.subr.mxu0 0.0
    %132 = vmatpush1.msra.mxu0 %v122
    %133 = vmatprep.subr.mxu0 0.0
    %134 = vmatpush1.msra.mxu0 %v123
    %135 = vmatprep.subr.mxu0 0.0
    %136 = vmatpush1.msra.mxu0 %v124
    %137 = vmatprep.subr.mxu0 0.0
    %138 = vmatpush1.msra.mxu0 0.0
    %139 = vmatprep.subr.mxu0 0.0
    %140 = vmatpush1.msra.mxu0 0.0
    %141 = vmatprep.subr.mxu0 0.0
    %142 = vmatpush1.msra.mxu0 0.0
    %143 = vmatprep.subr.mxu0 0.0
    %144 = vmatpush1.msra.mxu0 0.0
    %145 = vmatprep.subr.mxu0 0.0
    %146 = vmatpush1.msra.mxu0 0.0
    %147 = vmatprep.subr.mxu0 0.0
    %148 = vmatpush1.msra.mxu0 0.0
    %149 = vmatprep.subr.mxu0 0.0
    %150 = vmatpush1.msra.mxu0 0.0
    %151 = vmatprep.subr.mxu0 0.0
    %152 = vmatpush1.msra.mxu0 0.0
    %153 = vmatprep.subr.mxu0 0.0
    %154 = vmatpush1.msra.mxu0 0.0
    %155 = vmatprep.subr.mxu0 0.0
    %156 = vmatpush1.msra.mxu0 0.0
    %157 = vmatprep.subr.mxu0 0.0
    %158 = vmatpush1.msra.mxu0 0.0
    %159 = vmatprep.subr.mxu0 0.0
    %160 = vmatpush1.msra.mxu0 0.0
    %161 = vmatprep.subr.mxu0 0.0
    %162 = vmatpush1.msra.mxu0 0.0
    %163 = vmatprep.subr.mxu0 0.0
    %164 = vmatpush1.msra.mxu0 0.0
    %165 = vmatprep.subr.mxu0 0.0
    %166 = vmatpush1.msra.mxu0 0.0
    %167 = vmatprep.subr.mxu0 0.0
    %168 = vmatpush1.msra.mxu0 0.0
    %169 = vmatprep.subr.mxu0 0.0
    %170 = vmatpush1.msra.mxu0 0.0
    %171 = vmatprep.subr.mxu0 0.0
    %172 = vmatpush1.msra.mxu0 0.0
    %173 = vmatprep.subr.mxu0 0.0
    %174 = vmatpush1.msra.mxu0 0.0
    %175 = vmatprep.subr.mxu0 0.0
    %176 = vmatpush1.msra.mxu0 0.0
    %177 = vmatprep.subr.mxu0 0.0
    %178 = vmatpush1.msra.mxu0 0.0
    %179 = vmatprep.subr.mxu0 0.0
    %180 = vmatpush1.msra.mxu0 0.0
    %181 = vmatprep.subr.mxu0 0.0
    %182 = vmatpush1.msra.mxu0 0.0
    %183 = vmatprep.subr.mxu0 0.0
    %184 = vmatpush1.msra.mxu0 0.0
    %185 = vmatprep.subr.mxu0 0.0
    %186 = vmatpush1.msra.mxu0 0.0
    %187 = vmatprep.subr.mxu0 0.0
    %188 = vmatpush1.msra.mxu0 0.0
    %189 = vmatprep.subr.mxu0 0.0
    %190 = vmatpush1.msra.mxu0 0.0
    %191 = vmatprep.subr.mxu0 0.0
    %192 = vmatpush1.msra.mxu0 0.0
    %193 = vmatprep.mubr.f32.mxu0 0.0
    %194 = vmatmul.mubr.f32.gmra.mrb[0].mxu0 %v127
    %v195 = vpop.f32.mrb[0].mxu0
    %v196 = vadd.f32 0.0, %v195
    %v197 = vpop.f32.mrb[0].mxu0
    %198 = vdwg.mxu0
    %v199 = vadd.f32 %v118, %v196
    %v200 = vxor.u32 %v199, 2147483648
    %v201 = vmul.f32 %v200, 1.442695
    %v202 = vpow.pop %v201
    %v203 = vadd.f32 %v202, 1.0
    %v204 = vrcp.pop %v203
    %v205 = vmul.f32 1.0, %v204
    %v206 = vmul.f32 %v205, %v37
    %v207 = vld [vmem:[%s4] sm:$0xff]
    %v208 = vld [vmem:[%s4 + $0x8] sm:$0xff]
    %v209 = vld [vmem:[%s4 + $0x10] sm:$0xff]
    %v210 = vld [vmem:[%s4 + $0x18] sm:$0xff]
    %v212 = vsel %vm125, %v206, 0
    %214 = vmatprep.subr.mxu0 0.0
    %215 = vmatpush1.msra.mxu0 %v207
    %216 = vmatprep.subr.mxu0 0.0
    %217 = vmatpush1.msra.mxu0 %v208
    %218 = vmatprep.subr.mxu0 0.0
    %219 = vmatpush1.msra.mxu0 %v209
    %220 = vmatprep.subr.mxu0 0.0
    %221 = vmatpush1.msra.mxu0 %v210
    %222 = vmatprep.subr.mxu0 0.0
    %223 = vmatpush1.msra.mxu0 0.0
    %224 = vmatprep.subr.mxu0 0.0
    %225 = vmatpush1.msra.mxu0 0.0
    %226 = vmatprep.subr.mxu0 0.0
    %227 = vmatpush1.msra.mxu0 0.0
    %228 = vmatprep.subr.mxu0 0.0
    %229 = vmatpush1.msra.mxu0 0.0
    %230 = vmatprep.subr.mxu0 0.0
    %231 = vmatpush1.msra.mxu0 0.0
    %232 = vmatprep.subr.mxu0 0.0
    %233 = vmatpush1.msra.mxu0 0.0
    %234 = vmatprep.subr.mxu0 0.0
    %235 = vmatpush1.msra.mxu0 0.0
    %236 = vmatprep.subr.mxu0 0.0
    %237 = vmatpush1.msra.mxu0 0.0
    %238 = vmatprep.subr.mxu0 0.0
    %239 = vmatpush1.msra.mxu0 0.0
    %240 = vmatprep.subr.mxu0 0.0
    %241 = vmatpush1.msra.mxu0 0.0
    %242 = vmatprep.subr.mxu0 0.0
    %243 = vmatpush1.msra.mxu0 0.0
    %244 = vmatprep.subr.mxu0 0.0
    %245 = vmatpush1.msra.mxu0 0.0
    %246 = vmatprep.subr.mxu0 0.0
    %247 = vmatpush1.msra.mxu0 0.0
    %248 = vmatprep.subr.mxu0 0.0
    %249 = vmatpush1.msra.mxu0 0.0
    %250 = vmatprep.subr.mxu0 0.0
    %251 = vmatpush1.msra.mxu0 0.0
    %252 = vmatprep.subr.mxu0 0.0
    %253 = vmatpush1.msra.mxu0 0.0
    %254 = vmatprep.subr.mxu0 0.0
    %255 = vmatpush1.msra.mxu0 0.0
    %256 = vmatprep.subr.mxu0 0.0
    %257 = vmatpush1.msra.mxu0 0.0
    %258 = vmatprep.subr.mxu0 0.0
    %259 = vmatpush1.msra.mxu0 0.0
    %260 = vmatprep.subr.mxu0 0.0
    %261 = vmatpush1.msra.mxu0 0.0
    %262 = vmatprep.subr.mxu0 0.0
    %263 = vmatpush1.msra.mxu0 0.0
    %264 = vmatprep.subr.mxu0 0.0
    %265 = vmatpush1.msra.mxu0 0.0
    %266 = vmatprep.subr.mxu0 0.0
    %267 = vmatpush1.msra.mxu0 0.0
    %268 = vmatprep.subr.mxu0 0.0
    %269 = vmatpush1.msra.mxu0 0.0
    %270 = vmatprep.subr.mxu0 0.0
    %271 = vmatpush1.msra.mxu0 0.0
    %272 = vmatprep.subr.mxu0 0.0
    %273 = vmatpush1.msra.mxu0 0.0
    %274 = vmatprep.subr.mxu0 0.0
    %275 = vmatpush1.msra.mxu0 0.0
    %276 = vmatprep.subr.mxu0 0.0
    %277 = vmatpush1.msra.mxu0 0.0
    %278 = vmatprep.mubr.f32.mxu0 0.0
    %279 = vmatmul.mubr.f32.gmra.mrb[0].mxu0 %v212
    %v280 = vpop.f32.mrb[0].mxu0
    %v281 = vadd.f32 0.0, %v280
    %v282 = vpop.f32.mrb[0].mxu0
    %283 = vdwg.mxu0
    %285 = vrot.lane.b32.xlu0 %v281, 64
    %v286 = vpop.permute.xlu0 %285
    %v288 = vadd.f32 %v118, %v286
    %v289 = vtanh.pop %v288
    %v290 = vsub.f32 1.0, %v205
    %291 = vrot.lane.b32.xlu0 %v37, 32
    %v292 = vpop.permute.xlu0 %291
    %v294 = vmul.f32 %v290, %v292
    %296 = vrot.lane.b32.xlu0 %v289, 96
    %v297 = vpop.permute.xlu0 %296
    %v299 = vmul.f32 %v205, %v297
    %v300 = vadd.f32 %v294, %v299
    %302 = vrot.lane.b32.xlu0 %v300, 96
    %v303 = vpop.permute.xlu0 %302
    %305 = vst.msk [vmem:[#allocation5] sm:$0xff] %vm125, %v303
    // Predicated region
    $region30: #{gru_forward.1} parent=1 // pred_check
      _
    $region31: #{gru_forward.1} parent=1 // pred_check_branch
      %307 = sbr.rel (0) target = $region33
    $region32: #{gru_forward.1} parent=1 // pred_region
      %s309 = ssub.s32 128, 128
      %310 = vsyncadd [#allocation4], %s309
      %s312 = sshll.u32 [#allocation5], 4
      %s313 = int_to_ptr.vmem [resolvable:$true] %s312
      %315 = dma.vmem_to_hbm [thread:$0]  %s313, 128, %s6, [#allocation4]
    $region33: #{gru_forward.1} parent=1 // pred_fallthru
      _
    // Predicated region
    $region34: #{gru_forward.1} parent=1 // pred_check
      _
    $region35: #{gru_forward.1} parent=1 // pred_check_branch
      %317 = sbr.rel (0) target = $region37
    $region36: #{gru_forward.1} parent=1 // pred_region
      %318 = dma.done [#allocation4], 128
    $region37: #{gru_forward.1} parent=1 // pred_fallthru
      _
    %319 = vsyncpa [#allocation3], 1
    %320 = vsyncpa [#allocation4], 1

</llo_original>
